<compile_context>
chip_gen: v7x
topology: tpu7x:2x2x1
jax: 0.10.0
libtpu: 0.0.40
codegen_flags: <defaults>
</compile_context>

<pallas_src>
import jax
import jax.numpy as jnp
from jax.experimental import pallas as pl
from jax.experimental.pallas import tpu as pltpu


# ---------------- Pallas kernels ----------------

def bn_stats_kernel(x_ref, sum_ref, sq_ref):
    """Per-image, per-channel sum / sum-of-squares for training-mode BatchNorm.

    x_ref block is (1, C_in, H*W): channels on sublanes, pixels lane-dense.
    """
    x = x_ref[0]
    sum_ref[0] = jnp.sum(x, axis=1, keepdims=True)
    sq_ref[0] = jnp.sum(x * x, axis=1, keepdims=True)


def make_fused_kernel(H, W, C_in, C_out, KH, KW, pad, has_res_conv):
    HW = H * W
    P = pad * (W + 1)     # flat zero-pad so every tap shift is an in-bounds lane slice

    def fused_kernel(x_ref, scale_ref, shift_ref, colmask_ref, w_ref, b_ref,
                     o_ref, hpad_ref, slab_ref):
        # x_ref:       (1, C_in, HW)    raw input image (flat spatial, lane-dense)
        # scale/shift: (C_in, 1)        BatchNorm folded to per-channel scale/shift
        # colmask_ref: (KW, HW)         0/1 column-validity mask per horizontal tap
        # w_ref:       (C_out, K_total) 3x3 taps with the 1x1 conv folded in
        #                               (+ residual 1x1 columns if has_res_conv)
        # b_ref:       (C_out, 1)       bias of the trailing 1x1 conv
        # o_ref:       (1, C_out, HW)
        # hpad_ref:    VMEM (C_in, HW + 2P): BN+ReLU(x) with flat zero halo
        # slab_ref:    VMEM (K_total, HW):   im2col slab, built once, one GEMM
        x = x_ref[0]

        # Fused BatchNorm (scale/shift) + ReLU, lane-dense.
        h = jnp.maximum(x * scale_ref[...] + shift_ref[...], 0.0)

        # Flat zero-padded activation; halo strips re-zeroed every step (correct under
        # "parallel" per-core scratch), interior fully overwritten.
        hpad_ref[:, 0:P] = jnp.zeros((C_in, P), jnp.float32)
        hpad_ref[:, P + HW:] = jnp.zeros((C_in, P), jnp.float32)
        hpad_ref[:, P:P + HW] = h

        # im2col slab: tap (kh, kw) -> rows [k*C_in, (k+1)*C_in).  Each tap is a
        # static lane-offset slice of the flat padded buffer; rows above/below the
        # image land in the zero halo, horizontal wrap-around is masked out.
        for kh in range(KH):
            for kw in range(KW):
                d = (kh - pad) * W + (kw - pad)
                piece = hpad_ref[:, P + d:P + d + HW]
                if kw != pad:                      # horizontal taps need the column mask
                    piece = piece * colmask_ref[kw:kw + 1, :]
                k = kh * KW + kw
                slab_ref[k * C_in:(k + 1) * C_in, :] = piece
        if has_res_conv:
            slab_ref[KH * KW * C_in:, :] = x       # residual 1x1 rides the same GEMM

        # One GEMM for conv3x3 (+folded 1x1) (+residual 1x1), f32 accumulation.
        acc = jnp.dot(w_ref[...], slab_ref[...], preferred_element_type=jnp.float32)
        acc = acc + b_ref[...]
        if not has_res_conv:                       # identity shortcut: plain add
            acc = acc + x
        o_ref[0] = acc.astype(o_ref.dtype)         # lane-dense (C_out, HW) store

    return fused_kernel


# ---------------- wrapper ----------------

def res_block_mobile(x_nchw, params, *, kernel_size=3, stride=1, padding=1, eps=1e-5):
    # TODO(synk): only stride=1, dilation=1, groups=1 and 'same' padding
    # (2*padding == kernel_size-1) are implemented; strided / grouped variants need a
    # different tap layout.
    assert stride == 1 and 2 * padding == kernel_size - 1
    gamma, beta = params["gamma"], params["beta"]
    wd, wc, bc = params["w_conv3"], params["w_conv1"], params["b_conv1"]
    wr = params.get("w_res", None)

    N, C_in, H, W = x_nchw.shape
    C_out = wd.shape[0]
    KH = KW = kernel_size
    HW = H * W
    M = N * HW

    # Free contiguous view of the NCHW input: channels on sublanes, pixels on lanes.
    x = x_nchw.astype(jnp.float32).reshape(N, C_in, HW)

    # --- pass 1: BatchNorm batch statistics (training-mode BatchNorm2d) ---
    # TODO(synk): tile over HW (grid=(N, HW//T)) for very large images; whole-image
    # blocks are fine at these sizes.
    psum, psq = pl.pallas_call(
        bn_stats_kernel,
        out_shape=(jax.ShapeDtypeStruct((N, C_in, 1), jnp.float32),
                   jax.ShapeDtypeStruct((N, C_in, 1), jnp.float32)),
        grid=(N,),
        in_specs=[pl.BlockSpec((1, C_in, HW), lambda n: (n, 0, 0))],
        out_specs=(pl.BlockSpec((1, C_in, 1), lambda n: (n, 0, 0)),
                   pl.BlockSpec((1, C_in, 1), lambda n: (n, 0, 0))),
        compiler_params=pltpu.CompilerParams(dimension_semantics=("parallel",)),
    )(x)
    ch_sum = jnp.sum(psum, axis=0)                 # (C_in, 1)
    ch_sq = jnp.sum(psq, axis=0)                   # (C_in, 1)
    mean = ch_sum / M
    # TODO(synk): E[x^2]-E[x]^2 in f32 can cancel for large-mean / very large inputs;
    # switch to a shifted / two-level accumulation if that regime matters.
    var = ch_sq / M - mean * mean                  # biased variance (PyTorch training BN)
    g = gamma.reshape(C_in, 1).astype(jnp.float32)
    b = beta.reshape(C_in, 1).astype(jnp.float32)
    scale = g / jnp.sqrt(var + eps)                # (C_in, 1)
    shift = b - mean * scale                       # (C_in, 1)

    # --- weight folding (wrapper-side, tiny tensors) ---
    # Folded 3x3 taps: wfold[o,i,kh,kw] = sum_p wc[o,p] * wd[p,i,kh,kw]
    wfold = jnp.einsum("op,piyx->oiyx", wc[:, :, 0, 0], wd).astype(jnp.float32)
    w_taps = jnp.transpose(wfold, (0, 2, 3, 1)).reshape(C_out, KH * KW * C_in)
    has_res_conv = wr is not None
    if has_res_conv:
        w_big = jnp.concatenate([w_taps, wr[:, :, 0, 0].astype(jnp.float32)], axis=1)
    else:
        assert C_in == C_out, "identity shortcut needs C_in == C_out"
        w_big = w_taps
    K_total = w_big.shape[1]
    b_col = bc.reshape(C_out, 1).astype(jnp.float32)

    # Column-validity masks (kill horizontal wrap-around of the flat tap slices).
    col = jnp.arange(HW, dtype=jnp.int32) % W
    dx = jnp.arange(KW, dtype=jnp.int32).reshape(KW, 1) - padding
    colmask = ((col[None, :] + dx >= 0) & (col[None, :] + dx < W)).astype(jnp.float32)

    # --- pass 2: fused BN+ReLU + one-GEMM conv3x3(+folded 1x1) + residual + bias ---
    P = padding * (W + 1)
    kernel = make_fused_kernel(H, W, C_in, C_out, KH, KW, padding, has_res_conv)
    out = pl.pallas_call(
        kernel,
        out_shape=jax.ShapeDtypeStruct((N, C_out, HW), jnp.float32),
        grid=(N,),
        in_specs=[pl.BlockSpec((1, C_in, HW), lambda n: (n, 0, 0)),
                  pl.BlockSpec((C_in, 1), lambda n: (0, 0)),
                  pl.BlockSpec((C_in, 1), lambda n: (0, 0)),
                  pl.BlockSpec((KW, HW), lambda n: (0, 0)),
                  pl.BlockSpec((C_out, K_total), lambda n: (0, 0)),
                  pl.BlockSpec((C_out, 1), lambda n: (0, 0))],
        out_specs=pl.BlockSpec((1, C_out, HW), lambda n: (n, 0, 0)),
        scratch_shapes=[pltpu.VMEM((C_in, HW + 2 * P), jnp.float32),
                        pltpu.VMEM((K_total, HW), jnp.float32)],
        compiler_params=pltpu.CompilerParams(
            dimension_semantics=("parallel",)),    # images shard across TCs on v7x
    )(x, scale, shift, colmask, w_big, b_col)

    return out.reshape(N, C_out, H, W)             # free contiguous reshape, stays NCHW


# ---------------- pure-JAX reference (for correctness check) ----------------

def res_block_mobile_ref(x_nchw, params, *, kernel_size=3, padding=1, eps=1e-5):
    gamma, beta = params["gamma"], params["beta"]
    wd, wc, bc = params["w_conv3"], params["w_conv1"], params["b_conv1"]
    wr = params.get("w_res", None)
    x = jnp.transpose(x_nchw, (0, 2, 3, 1)).astype(jnp.float32)       # NHWC
    mean = jnp.mean(x, axis=(0, 1, 2))
    var = jnp.mean((x - mean) ** 2, axis=(0, 1, 2))
    h = jax.nn.relu((x - mean) / jnp.sqrt(var + eps) * gamma + beta)

    dn = ("NHWC", "HWIO", "NHWC")
    w3 = jnp.transpose(wd, (2, 3, 1, 0))
    w1 = jnp.transpose(wc, (2, 3, 1, 0))
    out = jax.lax.conv_general_dilated(h, w3, (1, 1), [(padding, padding)] * 2,
                                       dimension_numbers=dn)
    out = jax.lax.conv_general_dilated(out, w1, (1, 1), "VALID",
                                       dimension_numbers=dn) + bc
    if wr is None:
        res = x
    else:
        wrr = jnp.transpose(wr, (2, 3, 1, 0))
        res = jax.lax.conv_general_dilated(x, wrr, (1, 1), "VALID",
                                           dimension_numbers=dn)
    return jnp.transpose(out + res, (0, 3, 1, 2))


# ---------------- main ----------------

if __name__ == "__main__":
    N, C_in, H, W = 2, 4, 16, 16
    C_out, K = 8, 3

    key = jax.random.PRNGKey(0)
    k1, k2, k3, k4, k5, k6, kx = jax.random.split(key, 7)
    params = {
        "gamma":   1.0 + 0.1 * jax.random.normal(k1, (C_in,), jnp.float32),
        "beta":    0.1 * jax.random.normal(k2, (C_in,), jnp.float32),
        "w_conv3": 0.1 * jax.random.normal(k3, (C_out, C_in, K, K), jnp.float32),
        "w_conv1": 0.1 * jax.random.normal(k4, (C_out, C_out, 1, 1), jnp.float32),
        "b_conv1": 0.1 * jax.random.normal(k5, (C_out,), jnp.float32),
        "w_res":   0.1 * jax.random.normal(k6, (C_out, C_in, 1, 1), jnp.float32),
    }
    x = jax.random.normal(kx, (N, C_in, H, W), jnp.float32)

    out = res_block_mobile(x, params, kernel_size=K, stride=1, padding=1)
    out = jax.block_until_ready(out)

    ref = jax.block_until_ready(res_block_mobile_ref(x, params, kernel_size=K, padding=1))
    assert out.shape == (N, C_out, H, W)
    assert jnp.allclose(out, ref, atol=1e-4, rtol=1e-4), float(jnp.abs(out - ref).max())

    print("KERNEL_OK")
</pallas_src>

<mosaic_0001>
module attributes {stable_mosaic.version = 11 : i64} {
  func.func @bn_stats_kernel(%arg0: i32, %arg1: memref<1x4x256xf32, #tpu.memory_space<vmem>>, %arg2: memref<1x4x1xf32, #tpu.memory_space<vmem>>, %arg3: memref<1x4x1xf32, #tpu.memory_space<vmem>>) attributes {dimension_semantics = [#tpu.dimension_semantics<parallel>], iteration_bounds = array<i64: 2>, scalar_prefetch = 0 : i64, scratch_operands = 0 : i64, tpu.core_type = #tpu.core_type<tc>, window_params = [{transform_indices = @transform_0, window_bounds = array<i64: 1, 4, 256>}, {transform_indices = @transform_1, window_bounds = array<i64: 1, 4, 1>}, {transform_indices = @transform_2, window_bounds = array<i64: 1, 4, 1>}]} {
    %c0 = arith.constant 0 : index
    %c0_0 = arith.constant 0 : index
    %c0_1 = arith.constant 0 : index
    %0 = vector.load %arg1[%c0, %c0_0, %c0_1] : memref<1x4x256xf32, #tpu.memory_space<vmem>>, vector<1x4x256xf32>
    %1 = vector.shape_cast %0 : vector<1x4x256xf32> to vector<4x256xf32>
    %cst = arith.constant dense<0.000000e+00> : vector<4xf32>
    %2 = vector.multi_reduction <add>, %1, %cst [1] : vector<4x256xf32> to vector<4xf32>
    %3 = vector.shape_cast %2 : vector<4xf32> to vector<4x1xf32>
    %c0_2 = arith.constant 0 : index
    %c0_3 = arith.constant 0 : index
    %c0_4 = arith.constant 0 : index
    %4 = vector.load %arg2[%c0_2, %c0_3, %c0_4] : memref<1x4x1xf32, #tpu.memory_space<vmem>>, vector<1x4x1xf32>
    %5 = vector.shape_cast %4 : vector<1x4x1xf32> to vector<4x1xf32>
    %6 = vector.shape_cast %3 : vector<4x1xf32> to vector<1x4x1xf32>
    tpu.vector_store %arg2[%c0_2, %c0_3, %c0_4], %6 {strides = array<i32>} : memref<1x4x1xf32, #tpu.memory_space<vmem>>, vector<1x4x1xf32>,
    %7 = arith.mulf %1, %1 : vector<4x256xf32>
    %cst_5 = arith.constant dense<0.000000e+00> : vector<4xf32>
    %8 = vector.multi_reduction <add>, %7, %cst_5 [1] : vector<4x256xf32> to vector<4xf32>
    %9 = vector.shape_cast %8 : vector<4xf32> to vector<4x1xf32>
    %c0_6 = arith.constant 0 : index
    %c0_7 = arith.constant 0 : index
    %c0_8 = arith.constant 0 : index
    %10 = vector.load %arg3[%c0_6, %c0_7, %c0_8] : memref<1x4x1xf32, #tpu.memory_space<vmem>>, vector<1x4x1xf32>
    %11 = vector.shape_cast %10 : vector<1x4x1xf32> to vector<4x1xf32>
    %12 = vector.shape_cast %9 : vector<4x1xf32> to vector<1x4x1xf32>
    tpu.vector_store %arg3[%c0_6, %c0_7, %c0_8], %12 {strides = array<i32>} : memref<1x4x1xf32, #tpu.memory_space<vmem>>, vector<1x4x1xf32>,
    return
  }
  func.func @transform_0(%arg0: i32) -> (i32, i32, i32) {
    %c0_i32 = arith.constant 0 : i32
    %c0_i32_0 = arith.constant 0 : i32
    %c0_i32_1 = arith.constant 0 : i32
    return %arg0, %c0_i32, %c0_i32_0 : i32, i32, i32
  }
  func.func @transform_1(%arg0: i32) -> (i32, i32, i32) {
    %c0_i32 = arith.constant 0 : i32
    %c0_i32_0 = arith.constant 0 : i32
    %c0_i32_1 = arith.constant 0 : i32
    return %arg0, %c0_i32, %c0_i32_0 : i32, i32, i32
  }
  func.func @transform_2(%arg0: i32) -> (i32, i32, i32) {
    %c0_i32 = arith.constant 0 : i32
    %c0_i32_0 = arith.constant 0 : i32
    %c0_i32_1 = arith.constant 0 : i32
    return %arg0, %c0_i32, %c0_i32_0 : i32, i32, i32
  }
}

</mosaic_0001>

<llo_original>
// kernel: tpu_custom_call.1
$region0: #{tpu_custom_call.1}
  #allocation0 [shape = 'u32[]', space=smem, size = 0x4, offset = 0x4, fixed_abs, tag = 'smem constant byte address 0x4 - core index']
  #allocation1 [shape = 'u32[144,128]{1,0:T(1,128)}', space=vmem, size = 0x12000, scoped, tag = 'internal scratch']
  %s0 = inlined_call_operand.hbm [shape: f32[2,4,256], index: 0, kind: input, shape index: {}]
  %s1 = inlined_call_operand.vmem [shape: f32[2,4,1], index: 1, kind: output, shape index: {0}]
  %s2 = inlined_call_operand.vmem [shape: f32[2,4,1], index: 2, kind: output, shape index: {1}]
  %3 = xla_tuple %s1, %s2
  %s4 = sld [smem:[#allocation0]]
  $region49: #{tpu_custom_call.1} parent=0
    _
  %s6 = ssub.s32 1, %s4
  %s7 = scalar_select 0, %s6, %s4
  $region1: #{tpu_custom_call.1} parent=0
    #allocation2 [shape = 'u8[8192]{0}', space=vmem, size = 0x2000, scoped, tag = 'input window, operand 0']
    #allocation3 [shape = 's32[2]{0}', space=sflag, size = 0x8, scoped, tag = 'scoped memory for tpu_custom_call.1']
    %8 = vsyncpa [#allocation3], 0
    %s9 = scalar_lea.sflag [#allocation3], 1
    %10 = vsyncpa %s9, 0
    loop: start=0, step=1, limit=4
    $region2: #{tpu_custom_call.1} parent=1 // loop_pre_header
      _
    $region3: #{tpu_custom_call.1} parent=1 // loop_header
      %s12 = sphi 0, %s16
      %p13 = scmp.ge.s32.totalorder %s12, 4
      %s22 = sphi 0, %s24
      %s25 = sphi 0, %s22
      %s26 = sphi 0, %s25
      %s42 = sphi 0, %s26
      %s48 = sphi 0, %s50
      %s51 = sphi 0, %s48
      %s52 = sphi 0, %s51
      %s68 = sphi 0, %s52
      %s74 = sphi 0, %s76
      %s77 = sphi 0, %s74
      %s78 = sphi 0, %s77
      %s94 = sphi 0, %s78
    $region4: #{tpu_custom_call.1} parent=1 // loop_header_branch
      %15 = sbr.rel (%p13) target = $region8
    $region5: #{tpu_custom_call.1} parent=1 // loop_body
      %s17 = ssub.s32 %s12, 1
      %s18 = ssub.s32 %s12, 2
      %s19 = sadd.s32 %s12, 1
      %s20 = ssub.s32 %s12, %s19
      %p21 = scmp.eq.s32.totalorder %s20, 0
      %s23 = sadd.s32 %s22, 1
      %s24 = scalar_select %p21, %s22, %s23
      %p27 = pneg %p21
      %p28 = scmp.eq.s32.totalorder %s12, 1
      %p29 = por %p27, %p28
      %p30 = scmp.ne.s32.totalorder %s22, %s25
      %p31 = scmp.eq.s32.totalorder %s12, 0
      %p32 = por %p30, %p31
      %p33 = scmp.ne.s32.totalorder %s22, %s25
      %p34 = scmp.eq.s32.totalorder %s17, 1
      %p35 = por %p33, %p34
      %p36 = scmp.ne.s32.totalorder %s25, %s26
      %p37 = scmp.eq.s32.totalorder %s17, 0
      %p38 = por %p36, %p37
      %p39 = scmp.ne.s32.totalorder %s25, %s26
      %p40 = scmp.eq.s32.totalorder %s18, 1
      %p41 = por %p39, %p40
      %p43 = scmp.ne.s32.totalorder %s26, %s42
      %p44 = scmp.eq.s32.totalorder %s18, 0
      %p45 = por %p43, %p44
      %s46 = ssub.s32 %s12, %s19
      %p47 = scmp.eq.s32.totalorder %s46, 0
      %s49 = sadd.s32 %s48, 1
      %s50 = scalar_select %p47, %s48, %s49
      %p53 = pneg %p47
      %p54 = scmp.eq.s32.totalorder %s12, 1
      %p55 = por %p53, %p54
      %p56 = scmp.ne.s32.totalorder %s48, %s51
      %p57 = scmp.eq.s32.totalorder %s12, 0
      %p58 = por %p56, %p57
      %p59 = scmp.ne.s32.totalorder %s48, %s51
      %p60 = scmp.eq.s32.totalorder %s17, 1
      %p61 = por %p59, %p60
      %p62 = scmp.ne.s32.totalorder %s51, %s52
      %p63 = scmp.eq.s32.totalorder %s17, 0
      %p64 = por %p62, %p63
      %p65 = scmp.ne.s32.totalorder %s51, %s52
      %p66 = scmp.eq.s32.totalorder %s18, 1
      %p67 = por %p65, %p66
      %p69 = scmp.ne.s32.totalorder %s52, %s68
      %p70 = scmp.eq.s32.totalorder %s18, 0
      %p71 = por %p69, %p70
      %s72 = ssub.s32 %s12, %s19
      %p73 = scmp.eq.s32.totalorder %s72, 0
      %s75 = sadd.s32 %s74, 1
      %s76 = scalar_select %p73, %s74, %s75
      %p79 = pneg %p73
      %p80 = scmp.eq.s32.totalorder %s12, 1
      %p81 = por %p79, %p80
      %p82 = scmp.ne.s32.totalorder %s74, %s77
      %p83 = scmp.eq.s32.totalorder %s12, 0
      %p84 = por %p82, %p83
      %p85 = scmp.ne.s32.totalorder %s74, %s77
      %p86 = scmp.eq.s32.totalorder %s17, 1
      %p87 = por %p85, %p86
      %p88 = scmp.ne.s32.totalorder %s77, %s78
      %p89 = scmp.eq.s32.totalorder %s17, 0
      %p90 = por %p88, %p89
      %p91 = scmp.ne.s32.totalorder %s77, %s78
      %p92 = scmp.eq.s32.totalorder %s18, 1
      %p93 = por %p91, %p92
      %p95 = scmp.ne.s32.totalorder %s78, %s94
      %p96 = scmp.eq.s32.totalorder %s18, 0
      %p97 = por %p95, %p96
      %p98 = scmp.le.s32.totalorder 1, %s12
      %p99 = scmp.lt.s32.totalorder %s12, 3
      %p100 = pnand %p98, %p99
      %p101 = pneg %p100
      // Predicated region
      $region9: #{tpu_custom_call.1} parent=5 // pred_check
        _
      $region10: #{tpu_custom_call.1} parent=5 // pred_check_branch
        %103 = sbr.rel (%p100) target = $region12
      $region11: #{tpu_custom_call.1} parent=5 // pred_region
        %s104 = ssub.s32 %s12, 1
      $region12: #{tpu_custom_call.1} parent=5 // pred_fallthru
        _
      %p105 = scmp.lt.s32.totalorder %s12, 2
      // Predicated region
      $region13: #{tpu_custom_call.1} parent=5 // pred_check
        %p106 = pneg %p105
      $region14: #{tpu_custom_call.1} parent=5 // pred_check_branch
        %108 = sbr.rel (%p106) target = $region16
      $region15: #{tpu_custom_call.1} parent=5 // pred_region
        // Predicated region
        $region17: #{tpu_custom_call.1} parent=15 // pred_check
          %p109 = pneg %p32
        $region18: #{tpu_custom_call.1} parent=15 // pred_check_branch
          %111 = sbr.rel (%p109) target = $region20
        $region19: #{tpu_custom_call.1} parent=15 // pred_region
          %s112 = sand.u32 %s22, 1
          %s113 = scalar_lea.sflag [#allocation3], %s112
          %s114 = sand.u32 %s22, 1
          %s115 = smul.addr %s114, 8
          %s116 = scalar_lea.vmem [#allocation2], %s115
          %s118 = ssub.s32 128, 128
          %119 = vsyncadd %s113, %s118
          %s120 = smul.addr %s12, 2
          %s121 = smul.addr %s120, 64
          %s122 = scalar_lea.hbm %s0, %s121
          %s124 = sshll.u32 %s116, 4
          %s125 = int_to_ptr.vmem [resolvable:$true] %s124
          %127 = dma.hbm_to_vmem [thread:$0]  %s122, 128, %s125, %s113
        $region20: #{tpu_custom_call.1} parent=15 // pred_fallthru
          _
      $region16: #{tpu_custom_call.1} parent=5 // pred_fallthru
        _
      %p128 = scmp.le.s32.totalorder 1, %s12
      %p129 = scmp.lt.s32.totalorder %s12, 3
      %p130 = pnand %p128, %p129
      %p131 = pneg %p130
      // Predicated region
      $region21: #{tpu_custom_call.1} parent=5 // pred_check
        _
      $region22: #{tpu_custom_call.1} parent=5 // pred_check_branch
        %133 = sbr.rel (%p130) target = $region24
      $region23: #{tpu_custom_call.1} parent=5 // pred_region
        %s134 = ssub.s32 %s12, 1
        %s135 = sand.u32 %s25, 1
        %s136 = scalar_lea.sflag [#allocation3], %s135
        %s137 = sand.u32 %s25, 1
        %s138 = smul.addr %s137, 8
        %s139 = scalar_lea.vmem [#allocation2], %s138
        // Predicated region
        $region25: #{tpu_custom_call.1} parent=23 // pred_check
          %p140 = pneg %p38
        $region26: #{tpu_custom_call.1} parent=23 // pred_check_branch
          %142 = sbr.rel (%p140) target = $region28
        $region27: #{tpu_custom_call.1} parent=23 // pred_region
          %143 = dma.done %s136, 128
        $region28: #{tpu_custom_call.1} parent=23 // pred_fallthru
          _
        %s144 = sand.u32 %s25, 1
        %s145 = scalar_lea.sflag [#allocation3], %s144
        %s146 = sand.u32 %s25, 1
        %s147 = smul.addr %s146, 8
        %s148 = scalar_lea.vmem [#allocation2], %s147
        %p149 = pneg %p38
        %p150 = pneg %p35
        %p151 = pneg %p64
        %p152 = pneg %p61
        %p153 = scmp.lt.s32.totalorder %s17, 1
        %s154 = scalar_select %p153, %s17, 1
        %s155 = smul.addr %s154, 4
        %s156 = scalar_lea.vmem %s1, %s155
        %p157 = pneg %p90
        %p158 = pneg %p87
        %p159 = scmp.lt.s32.totalorder %s17, 1
        %s160 = scalar_select %p159, %s17, 1
        %s161 = smul.addr %s160, 4
        %s162 = scalar_lea.vmem %s2, %s161
        %p163 = scmp.lt.s32.totalorder %s17, 1
        %s164 = scalar_select %p163, %s17, 1
        %s165 = smul.addr %s164, 4
        %s166 = scalar_lea.vmem %s1, %s165
        %p167 = scmp.lt.s32.totalorder %s17, 1
        %s168 = scalar_select %p167, %s17, 1
        %s169 = smul.addr %s168, 4
        %s170 = scalar_lea.vmem %s2, %s169
        %v171 = vld [vmem:[%s139] sm:$0xff]
        %v173 = vcombine.high %v171, %v171
        %vm175 = vcmask 1043456
        %v176 = vsel %vm175, %v171, 0.0
        %v177 = vsel %vm175, %v173, 0.0
        %v178 = vadd.f32 %v176, %v177
        %179 = vadd.xlane.f32.xlu0 %v178
        %v180 = vpop.xlane.xlu0 %179
        %vm181 = vcmask 3072
        %182 = vst.msk [vmem:[%s166] sm:$0xf] %vm181, %v180
        %v183 = vmul.f32 %v171, %v171
        %v185 = vcombine.high %v183, %v183
        %v187 = vsel %vm175, %v183, 0.0
        %v188 = vsel %vm175, %v185, 0.0
        %v189 = vadd.f32 %v187, %v188
        %190 = vadd.xlane.f32.xlu0 %v189
        %v191 = vpop.xlane.xlu0 %190
        %192 = vst.msk [vmem:[%s170] sm:$0xf] %vm181, %v191
        %p193 = scmp.lt.s32.totalorder %s17, 1
        %s194 = scalar_select %p193, %s17, 1
        %s195 = smul.addr %s194, 4
        %s196 = scalar_lea.vmem %s1, %s195
        %p197 = scmp.lt.s32.totalorder %s17, 1
        %s198 = scalar_select %p197, %s17, 1
        %s199 = smul.addr %s198, 4
        %s200 = scalar_lea.vmem %s2, %s199
        // Predicated region
        $region29: #{tpu_custom_call.1} parent=23 // pred_check
          %p201 = pneg %p61
        $region30: #{tpu_custom_call.1} parent=23 // pred_check_branch
          %203 = sbr.rel (%p201) target = $region32
        $region31: #{tpu_custom_call.1} parent=23 // pred_region
          _
        $region32: #{tpu_custom_call.1} parent=23 // pred_fallthru
          _
        // Predicated region
        $region33: #{tpu_custom_call.1} parent=23 // pred_check
          %p204 = pneg %p87
        $region34: #{tpu_custom_call.1} parent=23 // pred_check_branch
          %206 = sbr.rel (%p204) target = $region36
        $region35: #{tpu_custom_call.1} parent=23 // pred_region
          _
        $region36: #{tpu_custom_call.1} parent=23 // pred_fallthru
          _
      $region24: #{tpu_custom_call.1} parent=5 // pred_fallthru
        _
      %p207 = scmp.le.s32.totalorder 2, %s12
      // Predicated region
      $region37: #{tpu_custom_call.1} parent=5 // pred_check
        %p208 = pneg %p207
      $region38: #{tpu_custom_call.1} parent=5 // pred_check_branch
        %210 = sbr.rel (%p208) target = $region40
      $region39: #{tpu_custom_call.1} parent=5 // pred_region
        %s211 = ssub.s32 %s12, 2
        // Predicated region
        $region41: #{tpu_custom_call.1} parent=39 // pred_check
          %p212 = pneg %p67
        $region42: #{tpu_custom_call.1} parent=39 // pred_check_branch
          %214 = sbr.rel (%p212) target = $region44
        $region43: #{tpu_custom_call.1} parent=39 // pred_region
          %p215 = scmp.lt.s32.totalorder %s18, 1
          %s216 = scalar_select %p215, %s18, 1
          %s217 = smul.addr %s216, 4
          %s218 = scalar_lea.vmem %s1, %s217
        $region44: #{tpu_custom_call.1} parent=39 // pred_fallthru
          _
        // Predicated region
        $region45: #{tpu_custom_call.1} parent=39 // pred_check
          %p219 = pneg %p93
        $region46: #{tpu_custom_call.1} parent=39 // pred_check_branch
          %221 = sbr.rel (%p219) target = $region48
        $region47: #{tpu_custom_call.1} parent=39 // pred_region
          %p222 = scmp.lt.s32.totalorder %s18, 1
          %s223 = scalar_select %p222, %s18, 1
          %s224 = smul.addr %s223, 4
          %s225 = scalar_lea.vmem %s2, %s224
        $region48: #{tpu_custom_call.1} parent=39 // pred_fallthru
          _
      $region40: #{tpu_custom_call.1} parent=5 // pred_fallthru
        _
    $region6: #{tpu_custom_call.1} parent=1 // loop_footer
      %s16 = sadd.s32 1, %s12
    $region7: #{tpu_custom_call.1} parent=1 // loop_footer_branch
      %11 = sbr.rel target = $region3
    $region8: #{tpu_custom_call.1} parent=1 // loop_exit
      _
    %226 = vsyncpa [#allocation3], 1
    %s227 = scalar_lea.sflag [#allocation3], 1
    %228 = vsyncpa %s227, 1

</llo_original>
